<compile_context>
chip_gen: v7x
topology: tpu7x:2x2x1
jax: 0.10.0
libtpu: 0.0.40
codegen_flags: <defaults>
</compile_context>

<pallas_src>
import functools

import jax
import jax.numpy as jnp
from jax.experimental import pallas as pl

# ---------------- configuration (matches kwargs of the torch module) ----------
B, CIN, H, W = 2, 3, 16, 16          # batch, input channels, spatial
F = 8                                # backbone feature channels
HW = H * W
TRIPLET_MARGIN = 1.0                 # numeric margin branch
MU = 0.01                            # weight on homography-consistency term
# VARIANT = "doubleline", TRIPLET_AGGREGATION = "channel-aware", LD = 2


# ============================ Pallas kernels ==================================

def _feature_kernel(x_ref, w_ref, b_ref, o_ref):
    """Pointwise (1x1) conv + ReLU over the whole batch folded into lanes.

    x: (CIN, B*HW)  w: (F, CIN)  b: (F, 1)  ->  o: (F, B*HW)
    K=CIN=3: unrolled VPU FMA chain instead of a tiny MXU matmul.
    """
    x = x_ref[...]                                             # (CIN, N)
    w = w_ref[...]                                             # (F, CIN)
    acc = w[:, 0:1] * x[0:1, :]                                # (F, N)
    for c in range(1, CIN):
        acc = acc + w[:, c:c + 1] * x[c:c + 1, :]
    o_ref[...] = jnp.maximum(acc + b_ref[...], 0.0)


def feature_extractor(x_nchw, w, b):
    """Synthetic backbone.feature_extractor: (B,CIN,H,W) -> (B,F,H,W)."""
    x = jnp.transpose(x_nchw, (1, 0, 2, 3)).reshape(CIN, B * HW).astype(jnp.float32)
    out = pl.pallas_call(
        _feature_kernel,
        out_shape=jax.ShapeDtypeStruct((F, B * HW), jnp.float32),
    )(x, w.astype(jnp.float32), b.astype(jnp.float32))
    return jnp.transpose(out.reshape(F, B, H, W), (1, 0, 2, 3))


def _fused_triplet_kernel(p1p_ref, p2p_ref, f1_ref, f2_ref,
                          m1_ref, m2_ref, m1p_ref, m2p_ref,
                          w_ref, b_ref, out_ref, *, margin):
    """Fused: feature-extract warped patches + DoubleLine channel-aware triplet.

    p1p/p2p: (B, CIN, HW) warped patches   f1/f2: (B, F, HW) data features
    m*:      (B, 1, HW)   masks            w: (F,CIN)  b: (F,1)
    out: (B, 4) = [num1, den1, num2, den2] per batch element (single store).
    """
    w = w_ref[...]                                             # (F, CIN)
    bias = b_ref[...]                                          # (F, 1)

    def feat(p):                                               # (B,CIN,HW) -> (B,F,HW)
        acc = p[:, 0:1, :] * w[None, :, 0:1]                   # (B,1,HW)*(1,F,1)
        for c in range(1, CIN):
            acc = acc + p[:, c:c + 1, :] * w[None, :, c:c + 1]
        return jnp.maximum(acc + bias[None, :, :], 0.0)

    f1p = feat(p1p_ref[...])                                   # (B, F, HW)
    f2p = feat(p2p_ref[...])
    f1 = f1_ref[...]
    f2 = f2_ref[...]

    l1 = jnp.abs(f1p - f2)
    l2 = jnp.abs(f2p - f1)
    l3 = jnp.abs(f1 - f2)

    # channel-aware aggregation with numeric margin: sum_c max(l - l3 + m, 0)
    lm1 = jnp.sum(jnp.maximum(l1 - l3 + margin, 0.0), axis=1)  # (B, HW)
    lm2 = jnp.sum(jnp.maximum(l2 - l3 + margin, 0.0), axis=1)

    w1 = (m1p_ref[...] * m2_ref[...])[:, 0, :]                 # (B, HW)
    w2 = (m2p_ref[...] * m1_ref[...])[:, 0, :]

    num1 = jnp.sum(w1 * lm1, axis=1, keepdims=True)            # (B, 1)
    den1 = jnp.sum(w1, axis=1, keepdims=True)
    num2 = jnp.sum(w2 * lm2, axis=1, keepdims=True)
    den2 = jnp.sum(w2, axis=1, keepdims=True)

    out_ref[...] = jnp.concatenate([num1, den1, num2, den2], axis=1)  # (B, 4)


def fused_triplet_stats(p1p, p2p, f1, f2, m1, m2, m1p, m2p, w, b, margin):
    p1p = p1p.reshape(B, CIN, HW).astype(jnp.float32)
    p2p = p2p.reshape(B, CIN, HW).astype(jnp.float32)
    f1 = f1.reshape(B, F, HW).astype(jnp.float32)
    f2 = f2.reshape(B, F, HW).astype(jnp.float32)
    masks = [a.reshape(B, 1, HW).astype(jnp.float32) for a in (m1, m2, m1p, m2p)]
    return pl.pallas_call(
        functools.partial(_fused_triplet_kernel, margin=margin),
        out_shape=jax.ShapeDtypeStruct((B, 4), jnp.float32),
    )(p1p, p2p, f1, f2, *masks, w.astype(jnp.float32), b.astype(jnp.float32))


# ======================= plain-JAX glue (warp / homography) ===================
# TODO(synk): DLT solve (jnp.linalg.solve) + bilinear grid-sample are
# data-dependent gathers / tiny linear solves; kept in plain JAX rather than
# faking a Pallas equivalent (could be expressed as 256x256 one-hot MXU matmuls).

def image_shape_to_corners(patch):
    h, w = patch.shape[-2], patch.shape[-1]
    c = jnp.array([[0.0, 0.0], [w - 1.0, 0.0], [w - 1.0, h - 1.0], [0.0, h - 1.0]],
                  dtype=jnp.float32)
    return jnp.tile(c[None], (patch.shape[0], 1, 1))               # (B,4,2)


def four_point_to_homography(corners, deltas):
    dst = corners + deltas
    x, y = corners[..., 0], corners[..., 1]                        # (B,4)
    u, v = dst[..., 0], dst[..., 1]
    z = jnp.zeros_like(x)
    o = jnp.ones_like(x)
    ax = jnp.stack([x, y, o, z, z, z, -u * x, -u * y], axis=-1)    # (B,4,8)
    ay = jnp.stack([z, z, z, x, y, o, -v * x, -v * y], axis=-1)
    A = jnp.concatenate([ax, ay], axis=1)                          # (B,8,8)
    bb = jnp.concatenate([u, v], axis=1)                           # (B,8)
    h8 = jnp.linalg.solve(A, bb[..., None])[..., 0]                # (B,8)
    h9 = jnp.concatenate([h8, jnp.ones((h8.shape[0], 1), h8.dtype)], axis=1)
    return h9.reshape(-1, 3, 3)


def warp_image(img, Hmat, target_h, target_w):
    """Inverse bilinear warp with zero padding. img: (B,C,h,w) NCHW."""
    b, c, h, w = img.shape
    ys, xs = jnp.meshgrid(jnp.arange(target_h, dtype=jnp.float32),
                          jnp.arange(target_w, dtype=jnp.float32), indexing="ij")
    grid = jnp.stack([xs.ravel(), ys.ravel(), jnp.ones(target_h * target_w)], axis=0)
    Hinv = jnp.linalg.inv(Hmat)
    src = jnp.einsum("bij,jk->bik", Hinv, grid)                    # (B,3,HW)
    eps = 1e-8
    sx = src[:, 0] / (src[:, 2] + eps)
    sy = src[:, 1] / (src[:, 2] + eps)
    x0 = jnp.floor(sx); y0 = jnp.floor(sy)
    x1 = x0 + 1.0; y1 = y0 + 1.0
    wa = (x1 - sx) * (y1 - sy)
    wb = (x1 - sx) * (sy - y0)
    wc = (sx - x0) * (y1 - sy)
    wd = (sx - x0) * (sy - y0)

    flat = img.reshape(b, c, h * w)

    def gather(ix, iy):
        valid = ((ix >= 0) & (ix <= w - 1) & (iy >= 0) & (iy <= h - 1)).astype(img.dtype)
        ixc = jnp.clip(ix, 0, w - 1).astype(jnp.int32)
        iyc = jnp.clip(iy, 0, h - 1).astype(jnp.int32)
        idx = iyc * w + ixc                                        # (B, HW)
        vals = jnp.take_along_axis(flat, idx[:, None, :], axis=2)  # (B, C, HW)
        return vals * valid[:, None, :]

    out = (gather(x0, y0) * wa[:, None, :] + gather(x0, y1) * wb[:, None, :]
           + gather(x1, y0) * wc[:, None, :] + gather(x1, y1) * wd[:, None, :])
    return out.reshape(b, c, target_h, target_w)


def _warp(image, delta_hat):
    corners = image_shape_to_corners(image)
    homography = four_point_to_homography(corners, delta_hat)
    warped = warp_image(image, homography, image.shape[-2], image.shape[-1])
    return warped, homography


# ================================ forward =====================================

def triplet_head_forward(params, data):
    patch_1, patch_2 = data["patch_1"], data["patch_2"]
    mask_1, mask_2 = data["mask_1"], data["mask_2"]
    f1, f2 = data["feature_1"], data["feature_2"]
    d1, d2 = data["target_1"], data["target_2"]

    # warps (OneLine/DoubleLine -> here DoubleLine)
    patch_1_prime, _ = _warp(patch_1, d1)
    m1p, h1 = _warp(mask_1, d1)
    patch_2_prime, _ = _warp(patch_2, d2)
    m2p, h2 = _warp(mask_2, d2)

    # fused hot path: feature-extract warped patches + triplet stats, one launch
    stats = fused_triplet_stats(patch_1_prime, patch_2_prime, f1, f2,
                                mask_1, mask_2, m1p, m2p,
                                params["w"], params["b"], TRIPLET_MARGIN)  # (B,4)
    num1, den1, num2, den2 = stats[:, 0], stats[:, 1], stats[:, 2], stats[:, 3]
    ln1 = jnp.sum(num1 / jnp.maximum(den1, 1.0))
    ln2 = jnp.sum(num2 / jnp.maximum(den2, 1.0))

    eye = jnp.tile(jnp.eye(3, dtype=h1.dtype), (B, 1, 1))
    ln3 = jnp.sum((jnp.matmul(h1, h2) - eye) ** 2)

    loss = ln1 + ln2 + MU * ln3
    delta_gt = data.get("delta", None)
    delta_hat = d1
    return loss, delta_gt, delta_hat


# ======================== pure-JAX reference (for checking) ===================

def _reference_loss(params, data):
    p1p, _ = _warp(data["patch_1"], data["target_1"])
    m1p, h1 = _warp(data["mask_1"], data["target_1"])
    p2p, _ = _warp(data["patch_2"], data["target_2"])
    m2p, h2 = _warp(data["mask_2"], data["target_2"])

    def feat(p):
        x = p.reshape(B, CIN, HW)
        y = jnp.einsum("fc,bcs->bfs", params["w"], x) + params["b"][None]
        return jnp.maximum(y, 0.0)

    f1p, f2p = feat(p1p), feat(p2p)
    f1 = data["feature_1"].reshape(B, F, HW)
    f2 = data["feature_2"].reshape(B, F, HW)
    l1, l2, l3 = jnp.abs(f1p - f2), jnp.abs(f2p - f1), jnp.abs(f1 - f2)
    lm1 = jnp.sum(jnp.maximum(l1 - l3 + TRIPLET_MARGIN, 0.0), axis=1)
    lm2 = jnp.sum(jnp.maximum(l2 - l3 + TRIPLET_MARGIN, 0.0), axis=1)
    w1 = m1p.reshape(B, HW) * data["mask_2"].reshape(B, HW)
    w2 = m2p.reshape(B, HW) * data["mask_1"].reshape(B, HW)
    ln1 = jnp.sum(jnp.sum(w1 * lm1, -1) / jnp.maximum(jnp.sum(w1, -1), 1.0))
    ln2 = jnp.sum(jnp.sum(w2 * lm2, -1) / jnp.maximum(jnp.sum(w2, -1), 1.0))
    eye = jnp.tile(jnp.eye(3, dtype=h1.dtype), (B, 1, 1))
    ln3 = jnp.sum((jnp.matmul(h1, h2) - eye) ** 2)
    return ln1 + ln2 + MU * ln3


# ================================== main ======================================

if __name__ == "__main__":
    key = jax.random.PRNGKey(0)
    k = iter(jax.random.split(key, 10))

    # deterministic synthetic backbone params (1x1 conv + ReLU)
    params = {
        "w": (0.1 * jax.random.normal(next(k), (F, CIN))).astype(jnp.float32),
        "b": (0.01 * jax.random.normal(next(k), (F, 1))).astype(jnp.float32),
    }

    patch_1 = jax.random.uniform(next(k), (B, CIN, H, W), dtype=jnp.float32)
    patch_2 = jax.random.uniform(next(k), (B, CIN, H, W), dtype=jnp.float32)
    mask_1 = jnp.ones((B, 1, H, W), jnp.float32)
    mask_2 = jnp.ones((B, 1, H, W), jnp.float32)
    target_1 = 2.0 * jax.random.uniform(next(k), (B, 4, 2), dtype=jnp.float32) - 1.0
    target_2 = 2.0 * jax.random.uniform(next(k), (B, 4, 2), dtype=jnp.float32) - 1.0
    delta_gt = 2.0 * jax.random.uniform(next(k), (B, 4, 2), dtype=jnp.float32) - 1.0

    data = {
        "patch_1": patch_1,
        "patch_2": patch_2,
        "mask_1": mask_1,
        "mask_2": mask_2,
        "feature_1": feature_extractor(patch_1, params["w"], params["b"]),
        "feature_2": feature_extractor(patch_2, params["w"], params["b"]),
        "target_1": target_1,
        "target_2": target_2,
        "delta": delta_gt,
    }

    fwd = jax.jit(triplet_head_forward)
    loss, dgt, dhat = fwd(params, data)
    jax.block_until_ready(loss)
    jax.block_until_ready(dhat)

    ref = _reference_loss(params, data)
    jax.block_until_ready(ref)

    assert loss.shape == () and jnp.isfinite(loss)
    assert abs(float(loss) - float(ref)) <= 1e-3 * (1.0 + abs(float(ref))), (loss, ref)
    print("KERNEL_OK")
</pallas_src>

<mosaic_0001>
module attributes {stable_mosaic.version = 11 : i64} {
  func.func @_feature_kernel(%arg0: memref<3x512xf32, #tpu.memory_space<vmem>>, %arg1: memref<8x3xf32, #tpu.memory_space<vmem>>, %arg2: memref<8x1xf32, #tpu.memory_space<vmem>>, %arg3: memref<8x512xf32, #tpu.memory_space<vmem>>) attributes {dimension_semantics = [], scalar_prefetch = 0 : i64, scratch_operands = 0 : i64, tpu.core_type = #tpu.core_type<tc>} {
    %c0 = arith.constant 0 : index
    %c0_0 = arith.constant 0 : index
    %0 = vector.load %arg0[%c0, %c0_0] : memref<3x512xf32, #tpu.memory_space<vmem>>, vector<3x512xf32>
    %c0_1 = arith.constant 0 : index
    %c0_2 = arith.constant 0 : index
    %1 = vector.load %arg1[%c0_1, %c0_2] : memref<8x3xf32, #tpu.memory_space<vmem>>, vector<8x3xf32>
    %2 = vector.extract_strided_slice %1 {offsets = [0, 0], sizes = [8, 1], strides = [1, 1]} : vector<8x3xf32> to vector<8x1xf32>
    %3 = vector.extract_strided_slice %0 {offsets = [0, 0], sizes = [1, 512], strides = [1, 1]} : vector<3x512xf32> to vector<1x512xf32>
    %4 = vector.broadcast %2 : vector<8x1xf32> to vector<8x512xf32>
    %5 = vector.broadcast %3 : vector<1x512xf32> to vector<8x512xf32>
    %6 = arith.mulf %4, %5 : vector<8x512xf32>
    %7 = vector.extract_strided_slice %1 {offsets = [0, 1], sizes = [8, 1], strides = [1, 1]} : vector<8x3xf32> to vector<8x1xf32>
    %8 = vector.extract_strided_slice %0 {offsets = [1, 0], sizes = [1, 512], strides = [1, 1]} : vector<3x512xf32> to vector<1x512xf32>
    %9 = vector.broadcast %7 : vector<8x1xf32> to vector<8x512xf32>
    %10 = vector.broadcast %8 : vector<1x512xf32> to vector<8x512xf32>
    %11 = arith.mulf %9, %10 : vector<8x512xf32>
    %12 = arith.addf %6, %11 : vector<8x512xf32>
    %13 = vector.extract_strided_slice %1 {offsets = [0, 2], sizes = [8, 1], strides = [1, 1]} : vector<8x3xf32> to vector<8x1xf32>
    %14 = vector.extract_strided_slice %0 {offsets = [2, 0], sizes = [1, 512], strides = [1, 1]} : vector<3x512xf32> to vector<1x512xf32>
    %15 = vector.broadcast %13 : vector<8x1xf32> to vector<8x512xf32>
    %16 = vector.broadcast %14 : vector<1x512xf32> to vector<8x512xf32>
    %17 = arith.mulf %15, %16 : vector<8x512xf32>
    %18 = arith.addf %12, %17 : vector<8x512xf32>
    %c0_3 = arith.constant 0 : index
    %c0_4 = arith.constant 0 : index
    %19 = vector.load %arg2[%c0_3, %c0_4] : memref<8x1xf32, #tpu.memory_space<vmem>>, vector<8x1xf32>
    %20 = vector.broadcast %19 : vector<8x1xf32> to vector<8x512xf32>
    %21 = arith.addf %18, %20 : vector<8x512xf32>
    %cst = arith.constant 0.000000e+00 : f32
    %22 = vector.broadcast %cst : f32 to vector<8x512xf32>
    %23 = arith.maximumf %21, %22 : vector<8x512xf32>
    %c0_5 = arith.constant 0 : index
    %c0_6 = arith.constant 0 : index
    %24 = vector.load %arg3[%c0_5, %c0_6] : memref<8x512xf32, #tpu.memory_space<vmem>>, vector<8x512xf32>
    tpu.vector_store %arg3[%c0_5, %c0_6], %23 {strides = array<i32>} : memref<8x512xf32, #tpu.memory_space<vmem>>, vector<8x512xf32>,
    return
  }
}

</mosaic_0001>

<llo_original>
// kernel: tpu_custom_call.1
$region0: #{tpu_custom_call.1}
  #allocation0 [shape = 'u32[]', space=smem, size = 0x4, offset = 0x4, fixed_abs, tag = 'smem constant byte address 0x4 - core index']
  #allocation1 [shape = 'u32[144,128]{1,0:T(1,128)}', space=vmem, size = 0x12000, scoped, tag = 'internal scratch']
  %s0 = inlined_call_operand.vmem [shape: f32[3,512], index: 0, kind: input, shape index: {}]
  %s1 = inlined_call_operand.vmem [shape: f32[8,3], index: 1, kind: input, shape index: {}]
  %s2 = inlined_call_operand.vmem [shape: f32[8,1], index: 2, kind: input, shape index: {}]
  %s3 = inlined_call_operand.hbm [shape: f32[8,512], index: 3, kind: output, shape index: {}]
  %s4 = sld [smem:[#allocation0]]
  $region22: #{tpu_custom_call.1} parent=0
    _
  %s6 = ssub.s32 1, %s4
  %s7 = scalar_select 0, %s6, %s4
  $region1: #{tpu_custom_call.1} parent=0
    #allocation2 [shape = 'u8[16384]{0}', space=vmem, size = 0x4000, scoped, tag = 'output window, operand 0, single buffered']
    #allocation3 [shape = 's32[1]{0}', space=sflag, size = 0x4, scoped, tag = 'scoped memory for tpu_custom_call.1']
    %8 = vsyncpa [#allocation3], 0
    // Predicated region
    $region2: #{tpu_custom_call.1} parent=1 // pred_check
      _
    $region3: #{tpu_custom_call.1} parent=1 // pred_check_branch
      %10 = sbr.rel (0) target = $region5
    $region4: #{tpu_custom_call.1} parent=1 // pred_region
      _
    $region5: #{tpu_custom_call.1} parent=1 // pred_fallthru
      _
    // Predicated region
    $region6: #{tpu_custom_call.1} parent=1 // pred_check
      _
    $region7: #{tpu_custom_call.1} parent=1 // pred_check_branch
      %12 = sbr.rel (0) target = $region9
    $region8: #{tpu_custom_call.1} parent=1 // pred_region
      _
    $region9: #{tpu_custom_call.1} parent=1 // pred_fallthru
      _
    // Predicated region
    $region10: #{tpu_custom_call.1} parent=1 // pred_check
      _
    $region11: #{tpu_custom_call.1} parent=1 // pred_check_branch
      %14 = sbr.rel (0) target = $region13
    $region12: #{tpu_custom_call.1} parent=1 // pred_region
      _
    $region13: #{tpu_custom_call.1} parent=1 // pred_fallthru
      _
    %v15 = vld [vmem:[%s0] sm:$0x77]
    %v16 = vld [vmem:[%s0 + $0x8] sm:$0x77]
    %v17 = vld [vmem:[%s1] sm:$0xff]
    %19 = vset.pattern.permute.xlu0 0
    %20 = vperm.xlu0 %19, %v17
    %v21 = vpop.permute.xlu0 %20
    %v25 = vlaneseq
    %v26 = vshrl.u32 %v25, 7
    %v27 = vsub.s32 0, %v26
    %v28 = vrot.slane %v15, %v27
    %v29 = vlaneseq
    %v30 = vshrl.u32 %v29, 7
    %v31 = vsub.s32 4, %v30
    %v32 = vrot.slane %v15, %v31
    %v33 = vlaneseq
    %v34 = vshrl.u32 %v33, 7
    %v35 = vsub.s32 0, %v34
    %v36 = vrot.slane %v16, %v35
    %v37 = vlaneseq
    %v38 = vshrl.u32 %v37, 7
    %v39 = vsub.s32 4, %v38
    %v40 = vrot.slane %v16, %v39
    %v45 = vlaneseq
    %v46 = vshrl.u32 %v45, 7
    %v47 = vsub.s32 0, %v46
    %v48 = vrot.slane %v28, %v47
    %v49 = vlaneseq
    %v50 = vshrl.u32 %v49, 7
    %v51 = vsub.s32 0, %v50
    %v52 = vrot.slane %v32, %v51
    %v53 = vlaneseq
    %v54 = vshrl.u32 %v53, 7
    %v55 = vsub.s32 0, %v54
    %v56 = vrot.slane %v36, %v55
    %v57 = vlaneseq
    %v58 = vshrl.u32 %v57, 7
    %v59 = vsub.s32 0, %v58
    %v60 = vrot.slane %v40, %v59
    %v61 = vmul.f32 %v21, %v48
    %v62 = vmul.f32 %v21, %v52
    %v63 = vmul.f32 %v21, %v56
    %v64 = vmul.f32 %v21, %v60
    %65 = vset.pattern.permute.xlu0 1
    %66 = vperm.xlu0 %65, %v17
    %v67 = vpop.permute.xlu0 %66
    %v69 = vlaneseq
    %v70 = vshrl.u32 %v69, 7
    %v71 = vsub.s32 1, %v70
    %v72 = vrot.slane %v15, %v71
    %v73 = vlaneseq
    %v74 = vshrl.u32 %v73, 7
    %v75 = vsub.s32 5, %v74
    %v76 = vrot.slane %v15, %v75
    %v77 = vlaneseq
    %v78 = vshrl.u32 %v77, 7
    %v79 = vsub.s32 1, %v78
    %v80 = vrot.slane %v16, %v79
    %v81 = vlaneseq
    %v82 = vshrl.u32 %v81, 7
    %v83 = vsub.s32 5, %v82
    %v84 = vrot.slane %v16, %v83
    %v89 = vlaneseq
    %v90 = vshrl.u32 %v89, 7
    %v91 = vsub.s32 1, %v90
    %v92 = vrot.slane %v72, %v91
    %v93 = vlaneseq
    %v94 = vshrl.u32 %v93, 7
    %v95 = vsub.s32 1, %v94
    %v96 = vrot.slane %v76, %v95
    %v97 = vlaneseq
    %v98 = vshrl.u32 %v97, 7
    %v99 = vsub.s32 1, %v98
    %v100 = vrot.slane %v80, %v99
    %v101 = vlaneseq
    %v102 = vshrl.u32 %v101, 7
    %v103 = vsub.s32 1, %v102
    %v104 = vrot.slane %v84, %v103
    %v105 = vmul.f32 %v67, %v92
    %v106 = vmul.f32 %v67, %v96
    %v107 = vmul.f32 %v67, %v100
    %v108 = vmul.f32 %v67, %v104
    %v109 = vadd.f32 %v61, %v105
    %v110 = vadd.f32 %v62, %v106
    %v111 = vadd.f32 %v63, %v107
    %v112 = vadd.f32 %v64, %v108
    %113 = vset.pattern.permute.xlu0 2
    %114 = vperm.xlu0 %113, %v17
    %v115 = vpop.permute.xlu0 %114
    %v117 = vlaneseq
    %v118 = vshrl.u32 %v117, 7
    %v119 = vsub.s32 2, %v118
    %v120 = vrot.slane %v15, %v119
    %v121 = vlaneseq
    %v122 = vshrl.u32 %v121, 7
    %v123 = vsub.s32 6, %v122
    %v124 = vrot.slane %v15, %v123
    %v125 = vlaneseq
    %v126 = vshrl.u32 %v125, 7
    %v127 = vsub.s32 2, %v126
    %v128 = vrot.slane %v16, %v127
    %v129 = vlaneseq
    %v130 = vshrl.u32 %v129, 7
    %v131 = vsub.s32 6, %v130
    %v132 = vrot.slane %v16, %v131
    %v137 = vlaneseq
    %v138 = vshrl.u32 %v137, 7
    %v139 = vsub.s32 2, %v138
    %v140 = vrot.slane %v120, %v139
    %v141 = vlaneseq
    %v142 = vshrl.u32 %v141, 7
    %v143 = vsub.s32 2, %v142
    %v144 = vrot.slane %v124, %v143
    %v145 = vlaneseq
    %v146 = vshrl.u32 %v145, 7
    %v147 = vsub.s32 2, %v146
    %v148 = vrot.slane %v128, %v147
    %v149 = vlaneseq
    %v150 = vshrl.u32 %v149, 7
    %v151 = vsub.s32 2, %v150
    %v152 = vrot.slane %v132, %v151
    %v153 = vmul.f32 %v115, %v140
    %v154 = vmul.f32 %v115, %v144
    %v155 = vmul.f32 %v115, %v148
    %v156 = vmul.f32 %v115, %v152
    %v157 = vadd.f32 %v109, %v153
    %v158 = vadd.f32 %v110, %v154
    %v159 = vadd.f32 %v111, %v155
    %v160 = vadd.f32 %v112, %v156
    %v161 = vld [vmem:[%s2] sm:$0xff]
    %163 = vset.pattern.permute.xlu0 0
    %164 = vperm.xlu0 %163, %v161
    %v165 = vpop.permute.xlu0 %164
    %v167 = vadd.f32 %v157, %v165
    %v168 = vadd.f32 %v158, %v165
    %v169 = vadd.f32 %v159, %v165
    %v170 = vadd.f32 %v160, %v165
    %v171 = vmax.f32 %v167, 0.0
    %v172 = vmax.f32 %v168, 0.0
    %v173 = vmax.f32 %v169, 0.0
    %v174 = vmax.f32 %v170, 0.0
    %175 = vst [vmem:[#allocation2] sm:$0xff] %v171
    %176 = vst [vmem:[#allocation2 + $0x8] sm:$0xff] %v172
    %177 = vst [vmem:[#allocation2 + $0x10] sm:$0xff] %v173
    %178 = vst [vmem:[#allocation2 + $0x18] sm:$0xff] %v174
    // Predicated region
    $region14: #{tpu_custom_call.1} parent=1 // pred_check
      _
    $region15: #{tpu_custom_call.1} parent=1 // pred_check_branch
      %180 = sbr.rel (0) target = $region17
    $region16: #{tpu_custom_call.1} parent=1 // pred_region
      %s182 = ssub.s32 512, 512
      %183 = vsyncadd [#allocation3], %s182
      %s185 = sshll.u32 [#allocation2], 4
      %s186 = int_to_ptr.vmem [resolvable:$true] %s185
      %188 = dma.vmem_to_hbm [thread:$0]  %s186, 512, %s3, [#allocation3]
    $region17: #{tpu_custom_call.1} parent=1 // pred_fallthru
      _
    // Predicated region
    $region18: #{tpu_custom_call.1} parent=1 // pred_check
      _
    $region19: #{tpu_custom_call.1} parent=1 // pred_check_branch
      %190 = sbr.rel (0) target = $region21
    $region20: #{tpu_custom_call.1} parent=1 // pred_region
      %191 = dma.done [#allocation3], 512
    $region21: #{tpu_custom_call.1} parent=1 // pred_fallthru
      _
    %192 = vsyncpa [#allocation3], 1

</llo_original>
